<compile_context>
chip_gen: v7x
topology: tpu7x:2x2x1
jax: 0.10.0
libtpu: 0.0.40
codegen_flags: <defaults>
</compile_context>

<pallas_src>
import jax
import jax.numpy as jnp
from jax import lax
from jax.experimental import pallas as pl
from jax.experimental.pallas import tpu as pltpu

_LANES = 128
_ALIGN_ELEMS = 8 * _LANES     # kernel handles a multiple of 1024 elements (8x128)
_MAX_TILE_ROWS = 4096         # (4096,128) f32 block = 2 MiB
_CHUNK_ROWS = 512             # inner accumulation chunk (256 KiB f32 temporaries)


def _round_up(x, m):
    return -(-x // m) * m


def _elem_loss(x, t, m):
    """Elementwise BCE-with-logits with boundary override of the target."""
    x = x.astype(jnp.float32)
    t = t.astype(jnp.float32)
    mb = m if m.dtype == jnp.bool_ else (m != 0)
    pred = (x > 0.5).astype(jnp.float32)          # threshold raw logits at 0.5 (spec)
    t_eff = jnp.where(mb, pred, t)
    # Numerically-stable BCEWithLogits: max(x,0) - x*t + log1p(exp(-|x|))
    return jnp.maximum(x, 0.0) - x * t_eff + jnp.log1p(jnp.exp(-jnp.abs(x)))


def _make_kernel(tile_rows, chunk_rows, rows_valid, has_ragged):
    n_chunks = tile_rows // chunk_rows

    def _chunk_partial(x_ref, t_ref, m_ref, c, masked):
        r0 = pl.multiple_of(c * chunk_rows, chunk_rows)
        x = x_ref[pl.ds(r0, chunk_rows), :]
        t = t_ref[pl.ds(r0, chunk_rows), :]
        m = m_ref[pl.ds(r0, chunk_rows), :]
        loss = _elem_loss(x, t, m)
        if masked:
            # Ragged last block: rows >= rows_valid hold unspecified data.
            # Keep this a select (not multiply-by-mask) so NaN/Inf garbage
            # is zeroed exactly.
            row = lax.broadcasted_iota(jnp.int32, (chunk_rows, _LANES), 0)
            grow = pl.program_id(0) * tile_rows + r0 + row
            loss = jnp.where(grow < rows_valid, loss, 0.0)
        # Fold (chunk,128) -> (8,128) elementwise (VPU); the single cheap
        # cross-lane reduce happens in the wrapper.
        return loss.reshape(chunk_rows // 8, 8, _LANES).sum(axis=0)

    def kernel(x_ref, t_ref, m_ref, o_ref):
        def accumulate(masked):
            def body(c, acc):
                return acc + _chunk_partial(x_ref, t_ref, m_ref, c, masked)
            return lax.fori_loop(0, n_chunks, body,
                                 jnp.zeros((8, _LANES), jnp.float32),
                                 unroll=True)

        if has_ragged:
            # Only the last block pays for the tail-mask index math.
            is_last = pl.program_id(0) == pl.num_programs(0) - 1

            @pl.when(is_last)
            def _():
                o_ref[0] = accumulate(True)

            @pl.when(jnp.logical_not(is_last))
            def _():
                o_ref[0] = accumulate(False)
        else:
            o_ref[0] = accumulate(False)

    return kernel


def bce_equal_boundary_loss(inputs, targets, boundary_masks):
    """inputs/targets: float arrays (e.g. NCHW), boundary_masks: bool array, same shape.

    Inputs/targets are consumed in their native dtype (cast to f32 in-kernel) and
    the mask is consumed as bool (1 B/elem): hand in narrow dtypes from the
    producer to cut HBM traffic — do NOT upcast/convert in the caller.
    """
    assert inputs.shape == targets.shape == boundary_masks.shape
    total = int(inputs.size)
    if total == 0:
        return jnp.float32(0.0)

    x_flat = inputs.reshape(-1)
    t_flat = targets.reshape(-1)
    m_flat = boundary_masks.reshape(-1)

    rem = total % _ALIGN_ELEMS
    main = total - rem

    # <1024-element ragged tail: computed with plain jnp (off the hot path)
    # instead of jnp.pad-ing the whole array (which would double HBM traffic).
    if rem:
        tail_sum = jnp.sum(
            _elem_loss(x_flat[main:], t_flat[main:], m_flat[main:]),
            dtype=jnp.float32)
    else:
        tail_sum = jnp.float32(0.0)

    if main == 0:
        return (tail_sum / jnp.float32(total)).astype(jnp.float32)

    rows = main // _LANES   # multiple of 8

    def as_2d(flat):
        if rem:
            flat = flat[:main]
        return flat.reshape(rows, _LANES)   # free reshape when rem == 0 (common case)

    x2 = as_2d(x_flat)
    t2 = as_2d(t_flat)
    m2 = as_2d(m_flat)      # bool passed straight through, no wrapper astype

    # Tile selection: big blocks to amortize per-step overhead, grid >= 2 where
    # possible (both v7x TCs share HBM), capped at 4096 rows so the
    # double-buffered blocks (~9 MiB) fit v5e's 16 MiB scoped-VMEM default.
    if rows < 64:
        tile = rows                                # full-dim block: legal for any dtype
        chunk = rows
    elif rows <= 2048:
        tile = _round_up(pl.cdiv(rows, 2), 32)     # <= 1024 rows, single whole-tile pass
        chunk = tile
    else:
        tile = min(_MAX_TILE_ROWS, _round_up(pl.cdiv(rows, 2), _CHUNK_ROWS))
        chunk = _CHUNK_ROWS
    grid = pl.cdiv(rows, tile)
    has_ragged = (rows % tile) != 0

    kernel = _make_kernel(tile, chunk, rows, has_ragged)

    bytes_accessed = (main * (x2.dtype.itemsize + t2.dtype.itemsize
                              + m2.dtype.itemsize)
                      + grid * 8 * _LANES * 4)

    partials = pl.pallas_call(
        kernel,
        out_shape=jax.ShapeDtypeStruct((grid, 8, _LANES), jnp.float32),
        grid_spec=pltpu.PrefetchScalarGridSpec(
            num_scalar_prefetch=0,
            grid=(grid,),
            in_specs=[
                pl.BlockSpec((tile, _LANES), lambda i: (i, 0)),
                pl.BlockSpec((tile, _LANES), lambda i: (i, 0)),
                pl.BlockSpec((tile, _LANES), lambda i: (i, 0)),
            ],
            out_specs=pl.BlockSpec((1, 8, _LANES), lambda i: (i, 0, 0)),
        ),
        compiler_params=pltpu.CompilerParams(
            dimension_semantics=("parallel",),     # independent blocks -> both TCs on v7x
        ),
        cost_estimate=pl.CostEstimate(
            flops=10 * main,
            transcendentals=2 * main,
            bytes_accessed=bytes_accessed,
        ),
    )(x2, t2, m2)

    main_sum = jnp.sum(partials, dtype=jnp.float32)
    return ((main_sum + tail_sum) / jnp.float32(total)).astype(jnp.float32)


def _reference_loss(inputs, targets, boundary_masks):
    x = inputs.astype(jnp.float32)
    t = targets.astype(jnp.float32)
    pred = jnp.where(x > 0.5, 1.0, 0.0)
    t_eff = jnp.where(boundary_masks, pred, t)
    loss = jnp.maximum(x, 0.0) - x * t_eff + jnp.log1p(jnp.exp(-jnp.abs(x)))
    return jnp.mean(loss)


if __name__ == "__main__":
    key = jax.random.PRNGKey(0)
    k1, k2, k3 = jax.random.split(key, 3)

    B, C, H, W = 2, 4, 16, 16  # NCHW
    inputs = jax.random.normal(k1, (B, C, H, W), dtype=jnp.float32) * 2.0
    targets = (jax.random.uniform(k2, (B, C, H, W)) > 0.5).astype(jnp.float32)
    boundary_masks = jax.random.uniform(k3, (B, C, H, W)) > 0.8  # bool mask

    loss = jax.block_until_ready(
        bce_equal_boundary_loss(inputs, targets, boundary_masks)
    )
    ref = jax.block_until_ready(_reference_loss(inputs, targets, boundary_masks))
    assert jnp.allclose(loss, ref, atol=1e-5, rtol=1e-5), (loss, ref)

    print("KERNEL_OK")
</pallas_src>

<mosaic_0001>
module attributes {stable_mosaic.version = 11 : i64} {
  func.func @kernel(%arg0: i32, %arg1: memref<16x128xf32, #tpu.memory_space<vmem>>, %arg2: memref<16x128xf32, #tpu.memory_space<vmem>>, %arg3: memref<16x128xi32, #tpu.memory_space<vmem>>, %arg4: memref<1x8x128xf32, #tpu.memory_space<vmem>>) attributes {dimension_semantics = [#tpu.dimension_semantics<parallel>], iteration_bounds = array<i64: 1>, scalar_prefetch = 0 : i64, scratch_operands = 0 : i64, tpu.core_type = #tpu.core_type<tc>, window_params = [{transform_indices = @transform_0, window_bounds = array<i64: 16, 128>}, {transform_indices = @transform_1, window_bounds = array<i64: 16, 128>}, {transform_indices = @transform_2, window_bounds = array<i64: 16, 128>}, {transform_indices = @transform_3, window_bounds = array<i64: 1, 8, 128>}]} {
    %cst = arith.constant 0.000000e+00 : f32
    %0 = vector.broadcast %cst : f32 to vector<8x128xf32>
    %c0_i32 = arith.constant 0 : i32
    %c16_i32 = arith.constant 16 : i32
    %1 = arith.muli %c0_i32, %c16_i32 : i32
    %2 = tpu.assume_multiple %1, 16 : i32
    %3 = arith.index_cast %2 : i32 to index
    %c0 = arith.constant 0 : index
    %4 = vector.load %arg1[%3, %c0] : memref<16x128xf32, #tpu.memory_space<vmem>>, vector<16x128xf32>
    %5 = arith.index_cast %2 : i32 to index
    %c0_0 = arith.constant 0 : index
    %6 = vector.load %arg2[%5, %c0_0] : memref<16x128xf32, #tpu.memory_space<vmem>>, vector<16x128xf32>
    %7 = arith.index_cast %2 : i32 to index
    %c0_1 = arith.constant 0 : index
    %8 = vector.load %arg3[%7, %c0_1] : memref<16x128xi32, #tpu.memory_space<vmem>>, vector<16x128xi32>
    %cst_2 = arith.constant dense<0> : vector<16x128xi32>
    %9 = arith.cmpi ne, %8, %cst_2 : vector<16x128xi32>
    %cst_3 = arith.constant 5.000000e-01 : f32
    %10 = vector.broadcast %cst_3 : f32 to vector<16x128xf32>
    %11 = arith.cmpf ogt, %4, %10 : vector<16x128xf32>
    %12 = arith.extui %11 : vector<16x128xi1> to vector<16x128xi32>
    %13 = arith.sitofp %12 : vector<16x128xi32> to vector<16x128xf32>
    %14 = arith.select %9, %13, %6 : vector<16x128xi1>, vector<16x128xf32>
    %cst_4 = arith.constant 0.000000e+00 : f32
    %15 = vector.broadcast %cst_4 : f32 to vector<16x128xf32>
    %16 = arith.maximumf %4, %15 : vector<16x128xf32>
    %17 = arith.mulf %4, %14 : vector<16x128xf32>
    %18 = arith.subf %16, %17 : vector<16x128xf32>
    %19 = math.absf %4 : vector<16x128xf32>
    %cst_5 = arith.constant 0.000000e+00 : f32
    %20 = vector.broadcast %cst_5 : f32 to vector<16x128xf32>
    %21 = arith.subf %20, %19 : vector<16x128xf32>
    %22 = math.exp %21 : vector<16x128xf32>
    %23 = math.log1p %22 : vector<16x128xf32>
    %24 = arith.addf %18, %23 : vector<16x128xf32>
    %25 = vector.shape_cast %24 : vector<16x128xf32> to vector<2x8x128xf32>
    %cst_6 = arith.constant dense<0.000000e+00> : vector<8x128xf32>
    %26 = vector.multi_reduction <add>, %25, %cst_6 [0] : vector<2x8x128xf32> to vector<8x128xf32>
    %27 = arith.addf %0, %26 : vector<8x128xf32>
    %c1_i32 = arith.constant 1 : i32
    %c0_7 = arith.constant 0 : index
    %c0_8 = arith.constant 0 : index
    %c0_9 = arith.constant 0 : index
    %28 = vector.load %arg4[%c0_7, %c0_8, %c0_9] : memref<1x8x128xf32, #tpu.memory_space<vmem>>, vector<1x8x128xf32>
    %29 = vector.shape_cast %28 : vector<1x8x128xf32> to vector<8x128xf32>
    %30 = vector.shape_cast %27 : vector<8x128xf32> to vector<1x8x128xf32>
    tpu.vector_store %arg4[%c0_7, %c0_8, %c0_9], %30 {strides = array<i32>} : memref<1x8x128xf32, #tpu.memory_space<vmem>>, vector<1x8x128xf32>,
    return
  }
  func.func @transform_0(%arg0: i32) -> (i32, i32) {
    %c0_i32 = arith.constant 0 : i32
    %c0_i32_0 = arith.constant 0 : i32
    return %arg0, %c0_i32 : i32, i32
  }
  func.func @transform_1(%arg0: i32) -> (i32, i32) {
    %c0_i32 = arith.constant 0 : i32
    %c0_i32_0 = arith.constant 0 : i32
    return %arg0, %c0_i32 : i32, i32
  }
  func.func @transform_2(%arg0: i32) -> (i32, i32) {
    %c0_i32 = arith.constant 0 : i32
    %c0_i32_0 = arith.constant 0 : i32
    return %arg0, %c0_i32 : i32, i32
  }
  func.func @transform_3(%arg0: i32) -> (i32, i32, i32) {
    %c0_i32 = arith.constant 0 : i32
    %c0_i32_0 = arith.constant 0 : i32
    %c0_i32_1 = arith.constant 0 : i32
    return %arg0, %c0_i32, %c0_i32_0 : i32, i32, i32
  }
}

</mosaic_0001>

<llo_original>
// kernel: tpu_custom_call.1
$region0: #{tpu_custom_call.1}
  #allocation0 [shape = 'u32[]', space=smem, size = 0x4, offset = 0x4, fixed_abs, tag = 'smem constant byte address 0x4 - core index']
  #allocation1 [shape = 'u32[144,128]{1,0:T(1,128)}', space=vmem, size = 0x12000, scoped, tag = 'internal scratch']
  %s0 = inlined_call_operand.vmem [shape: f32[16,128], index: 0, kind: input, shape index: {}]
  %s1 = inlined_call_operand.hbm [shape: f32[16,128], index: 1, kind: input, shape index: {}]
  %s2 = inlined_call_operand.vmem [shape: s32[16,128], index: 2, kind: input, shape index: {}]
  %s3 = inlined_call_operand.hbm [shape: f32[1,8,128], index: 3, kind: output, shape index: {}]
  %s4 = sld [smem:[#allocation0]]
  $region26: #{tpu_custom_call.1} parent=0
    _
  %s6 = ssub.s32 1, %s4
  %s7 = scalar_select 0, %s6, %s4
  $region1: #{tpu_custom_call.1} parent=0
    #allocation2 [shape = 'u8[8192]{0}', space=vmem, size = 0x2000, scoped, tag = 'input window, operand 1, single buffered']
    #allocation3 [shape = 's32[1]{0}', space=sflag, size = 0x4, scoped, tag = 'scoped memory for tpu_custom_call.1']
    #allocation4 [shape = 's32[1]{0}', space=sflag, size = 0x4, scoped, tag = 'scoped memory for tpu_custom_call.1']
    #allocation5 [shape = 'u8[4096]{0}', space=vmem, size = 0x1000, scoped, tag = 'output window, operand 0, single buffered']
    %8 = vsyncpa [#allocation3], 0
    %9 = vsyncpa [#allocation4], 0
    // Predicated region
    $region2: #{tpu_custom_call.1} parent=1 // pred_check
      _
    $region3: #{tpu_custom_call.1} parent=1 // pred_check_branch
      %11 = sbr.rel (0) target = $region5
    $region4: #{tpu_custom_call.1} parent=1 // pred_region
      _
    $region5: #{tpu_custom_call.1} parent=1 // pred_fallthru
      _
    // Predicated region
    $region6: #{tpu_custom_call.1} parent=1 // pred_check
      _
    $region7: #{tpu_custom_call.1} parent=1 // pred_check_branch
      %13 = sbr.rel (0) target = $region9
    $region8: #{tpu_custom_call.1} parent=1 // pred_region
      %s15 = ssub.s32 256, 256
      %16 = vsyncadd [#allocation3], %s15
      %s17 = sshll.u32 [#allocation2], 4
      %s18 = int_to_ptr.vmem [resolvable:$true] %s17
      %23 = dma.hbm_to_vmem [thread:$0]  %s1, 256, %s18, [#allocation3], 128, 128, 8
    $region9: #{tpu_custom_call.1} parent=1 // pred_fallthru
      _
    // Predicated region
    $region10: #{tpu_custom_call.1} parent=1 // pred_check
      _
    $region11: #{tpu_custom_call.1} parent=1 // pred_check_branch
      %25 = sbr.rel (0) target = $region13
    $region12: #{tpu_custom_call.1} parent=1 // pred_region
      _
    $region13: #{tpu_custom_call.1} parent=1 // pred_fallthru
      _
    // Predicated region
    $region14: #{tpu_custom_call.1} parent=1 // pred_check
      _
    $region15: #{tpu_custom_call.1} parent=1 // pred_check_branch
      %27 = sbr.rel (0) target = $region17
    $region16: #{tpu_custom_call.1} parent=1 // pred_region
      %28 = dma.done [#allocation3], 256
    $region17: #{tpu_custom_call.1} parent=1 // pred_fallthru
      _
    %v29 = vld [vmem:[%s0] sm:$0xff]
    %v30 = vld [vmem:[%s0 + $0x8] sm:$0xff]
    %v31 = vld [vmem:[#allocation2] sm:$0xff]
    %v32 = vld [vmem:[#allocation2 + $0x8] sm:$0xff]
    %v33 = vld [vmem:[%s2] sm:$0xff]
    %v34 = vld [vmem:[%s2 + $0x8] sm:$0xff]
    %vm35 = vcmp.ne.s32.totalorder %v33, 0
    %vm36 = vcmp.ne.s32.totalorder %v34, 0
    %vm37 = vcmp.gt.f32.partialorder %v29, 0.5
    %vm38 = vcmp.gt.f32.partialorder %v30, 0.5
    %v39 = vsel %vm37, 1, 0
    %v40 = vsel %vm38, 1, 0
    %v41 = vcvt.s32.f32 %v39
    %v42 = vcvt.s32.f32 %v40
    %v43 = vsel %vm35, %v41, %v31
    %v44 = vsel %vm36, %v42, %v32
    %v45 = vmax.f32 %v29, 0.0
    %v46 = vmax.f32 %v30, 0.0
    %v47 = vmul.f32 %v29, %v43
    %v48 = vmul.f32 %v30, %v44
    %v49 = vsub.f32 %v45, %v47
    %v50 = vsub.f32 %v46, %v48
    %v51 = vand.u32 2147483647, %v29
    %v52 = vand.u32 2147483647, %v30
    %v53 = vsub.f32 0.0, %v51
    %v54 = vsub.f32 0.0, %v52
    %v55 = vmul.f32 %v53, 1.442695
    %v56 = vpow.pop %v55
    %v57 = vmul.f32 %v54, 1.442695
    %v58 = vpow.pop %v57
    %v59 = vadd.f32 %v56, 1.0
    %v60 = vlog2.pop %v59
    %v61 = vmul.f32 %v60, 0.6931472
    %v62 = vmul.f32 -0.5, %v56
    %v63 = vadd.f32 %v62, 1.0
    %v64 = vmul.f32 %v63, %v56
    %v65 = vand.u32 2147483647, %v56
    %vm66 = vcmp.lt.f32.partialorder %v65, 0.0004427343
    %v67 = vsel %vm66, %v64, %v61
    %v68 = vadd.f32 %v58, 1.0
    %v69 = vlog2.pop %v68
    %v70 = vmul.f32 %v69, 0.6931472
    %v71 = vmul.f32 -0.5, %v58
    %v72 = vadd.f32 %v71, 1.0
    %v73 = vmul.f32 %v72, %v58
    %v74 = vand.u32 2147483647, %v58
    %vm75 = vcmp.lt.f32.partialorder %v74, 0.0004427343
    %v76 = vsel %vm75, %v73, %v70
    %v77 = vadd.f32 %v49, %v67
    %v78 = vadd.f32 %v50, %v76
    %v79 = vadd.f32 %v77, %v78
    %v80 = vadd.f32 %v79, 0.0
    %81 = vst [vmem:[#allocation5] sm:$0xff] %v80
    // Predicated region
    $region18: #{tpu_custom_call.1} parent=1 // pred_check
      _
    $region19: #{tpu_custom_call.1} parent=1 // pred_check_branch
      %83 = sbr.rel (0) target = $region21
    $region20: #{tpu_custom_call.1} parent=1 // pred_region
      %s85 = ssub.s32 128, 128
      %86 = vsyncadd [#allocation4], %s85
      %s88 = sshll.u32 [#allocation5], 4
      %s89 = int_to_ptr.vmem [resolvable:$true] %s88
      %91 = dma.vmem_to_hbm [thread:$0]  %s89, 128, %s3, [#allocation4]
    $region21: #{tpu_custom_call.1} parent=1 // pred_fallthru
      _
    // Predicated region
    $region22: #{tpu_custom_call.1} parent=1 // pred_check
      _
    $region23: #{tpu_custom_call.1} parent=1 // pred_check_branch
      %93 = sbr.rel (0) target = $region25
    $region24: #{tpu_custom_call.1} parent=1 // pred_region
      %94 = dma.done [#allocation4], 128
    $region25: #{tpu_custom_call.1} parent=1 // pred_fallthru
      _
    %95 = vsyncpa [#allocation3], 1
    %96 = vsyncpa [#allocation4], 1

</llo_original>
